<compile_context>
chip_gen: v7x
topology: tpu7x:2x2x1
jax: 0.10.0
libtpu: 0.0.40
codegen_flags: <defaults>
</compile_context>

<pallas_src>
import jax
import jax.numpy as jnp
import numpy as np
from jax.experimental import pallas as pl
from jax.experimental.pallas import tpu as pltpu


def wrapped_model_kernel(x_ref, w1_ref, b1_ref, q_ref, w2_ref, b2_ref,
                         logits_ref, attn_ref):
    # x_ref block: [B, C, HW]  (HW on lanes end-to-end)
    B, C, HW = x_ref.shape

    x = x_ref[...]                                        # [B, C, HW]
    w1 = w1_ref[...]                                      # [C, D, 1]

    # 1x1-conv channel mixer as VPU broadcast-FMA over C (K=C too small for
    # MXU).  Accumulator init fused with the bias + first channel.
    acc = b1_ref[...] + w1[0:1] * x[:, 0:1, :]            # [B, D, HW]
    for c in range(1, C):                                 # static unroll, C tiny
        acc = acc + w1[c:c + 1] * x[:, c:c + 1, :]
    h = jnp.maximum(acc, 0.0)                             # [B, D, HW]

    # attention scores, lane-dense over HW: VPU mul + sublane reduce over D
    s = jnp.sum(q_ref[...] * h, axis=1, keepdims=True)    # [B, 1, HW]

    # softmax over spatial positions (lane axis), max-subtracted, exact divide
    m = jnp.max(s, axis=2, keepdims=True)                 # [B, 1, 1]
    e = jnp.exp(s - m)                                    # EUP, full lane width
    denom = jnp.sum(e, axis=2, keepdims=True)             # [B, 1, 1]
    a = e / denom                                         # [B, 1, HW]

    # attention pooling: VPU mul + lane reduce over HW
    pooled = jnp.sum(a * h, axis=2, keepdims=True)        # [B, D, 1]

    # classification head into lane-padded NC_pad lanes:
    # [B,D,1]*[1,D,NC_pad] -> sublane reduce over D -> [B, 1, NC_pad]
    logits = jnp.sum(pooled * w2_ref[...], axis=1, keepdims=True) + b2_ref[...]

    # Lane-dense stores into 2-D output slabs (B on sublanes).  B is a static
    # Python int here, so this unrolls into B per-row unmasked-lane stores.
    for b in range(B):
        logits_ref[pl.ds(b, 1), :] = logits[b]            # [1, NC_pad]
        attn_ref[pl.ds(b, 1), :] = a[b]                   # [1, HW]


def wrapped_model_forward(x_nchw, params):
    """x_nchw: [B, C, H, W] float32 (PyTorch layout). Returns dict like ModelWrapper."""
    B, C, H, W = x_nchw.shape
    HW = H * W
    w1, b1, q, w2, b2 = params
    D = w1.shape[1]
    NC = w2.shape[1]
    NC_pad = max(128, ((NC + 127) // 128) * 128)          # lane-dense logits slab

    # Keep HW on lanes: NCHW -> [B, C, HW] is a free reshape (no HBM transpose).
    x = x_nchw.reshape(B, C, HW)

    # Kernel-friendly parameter layouts: D on sublanes, HW / NC_pad on lanes.
    w1_3d = w1[:, :, None]                                # [C, D, 1]
    b1_3d = b1.reshape(1, D, 1)                           # [1, D, 1]
    q_3d = q.reshape(1, D, 1)                             # [1, D, 1]
    w2_pad = jnp.pad(w2, ((0, 0), (0, NC_pad - NC)))[None, :, :]   # [1, D, NC_pad]
    b2_pad = jnp.pad(b2, ((0, 0), (0, NC_pad - NC))).reshape(1, 1, NC_pad)

    flops = B * (2 * C * D * HW + 4 * D * HW + 2 * D * NC_pad + 5 * HW)
    bytes_accessed = 4 * (B * C * HW + C * D + 3 * D + D * NC_pad + NC_pad
                          + B * NC_pad + B * HW)

    # Single grid step: whole batch is one block (intermediates fit the vreg
    # file comfortably at B=2, D=32, HW=256).  For much larger B, add a batch
    # grid axis (CORE_PARALLEL on v7x) instead of growing the block.
    logits2, attn2 = pl.pallas_call(
        wrapped_model_kernel,
        out_shape=(
            jax.ShapeDtypeStruct((B, NC_pad), jnp.float32),
            jax.ShapeDtypeStruct((B, HW), jnp.float32),
        ),
        grid_spec=pltpu.PrefetchScalarGridSpec(
            num_scalar_prefetch=0,
            grid=(1,),
            in_specs=[
                pl.BlockSpec((B, C, HW), lambda i: (0, 0, 0)),       # x
                pl.BlockSpec((C, D, 1), lambda i: (0, 0, 0)),        # W1
                pl.BlockSpec((1, D, 1), lambda i: (0, 0, 0)),        # b1
                pl.BlockSpec((1, D, 1), lambda i: (0, 0, 0)),        # q
                pl.BlockSpec((1, D, NC_pad), lambda i: (0, 0, 0)),   # W2 (padded)
                pl.BlockSpec((1, 1, NC_pad), lambda i: (0, 0, 0)),   # b2 (padded)
            ],
            out_specs=[
                pl.BlockSpec((B, NC_pad), lambda i: (0, 0)),         # logits slab
                pl.BlockSpec((B, HW), lambda i: (0, 0)),             # attention
            ],
        ),
        compiler_params=pltpu.CompilerParams(
            dimension_semantics=("arbitrary",)),
        cost_estimate=pl.CostEstimate(
            flops=int(flops),
            transcendentals=int(B * HW),
            bytes_accessed=int(bytes_accessed)),
    )(x, w1_3d, b1_3d, q_3d, w2_pad, b2_pad)

    logits = logits2[:, :NC]
    attn = attn2
    return {
        "logits": logits,
        "attention_weights": attn,
        "router_decisions": None,   # wrapped model has no router
    }


def _reference_forward(x_nchw, params):
    """Pure-JAX reference for correctness checking (full-precision contractions)."""
    w1, b1, q, w2, b2 = params
    B, C, H, W = x_nchw.shape
    hp = jax.lax.Precision.HIGHEST
    x = jnp.transpose(x_nchw, (0, 2, 3, 1)).reshape(B, H * W, C)
    h = jnp.maximum(jnp.einsum("bsc,cd->bsd", x, w1, precision=hp) + b1, 0.0)
    s = jnp.einsum("bsd,do->bso", h, q, precision=hp)[..., 0]      # [B, HW]
    a = jax.nn.softmax(s, axis=-1)
    pooled = jnp.einsum("bs,bsd->bd", a, h, precision=hp)
    logits = jnp.einsum("bd,dn->bn", pooled, w2, precision=hp) + b2[0]
    return logits, a


if __name__ == "__main__":
    # small shapes consistent with an image-classifier forward
    B, C, H, W = 2, 4, 16, 16
    D, NC = 32, 8

    key = jax.random.PRNGKey(0)
    kx, k1, k2, k3, k4, k5 = jax.random.split(key, 6)

    x = jax.random.normal(kx, (B, C, H, W), dtype=jnp.float32)

    w1 = jax.random.normal(k1, (C, D), dtype=jnp.float32) * 0.1
    b1 = jax.random.normal(k2, (1, D), dtype=jnp.float32) * 0.01
    q = jax.random.normal(k3, (D, 1), dtype=jnp.float32) * 0.1
    w2 = jax.random.normal(k4, (D, NC), dtype=jnp.float32) * 0.1
    b2 = jax.random.normal(k5, (1, NC), dtype=jnp.float32) * 0.01
    params = (w1, b1, q, w2, b2)

    out = wrapped_model_forward(x, params)
    jax.block_until_ready(out["logits"])
    jax.block_until_ready(out["attention_weights"])

    ref_logits, ref_attn = _reference_forward(x, params)
    # exact softmax division now -> tight tolerances
    np.testing.assert_allclose(np.asarray(out["logits"]),
                               np.asarray(ref_logits), rtol=1e-5, atol=1e-5)
    np.testing.assert_allclose(np.asarray(out["attention_weights"]),
                               np.asarray(ref_attn), rtol=1e-5, atol=1e-6)

    print("KERNEL_OK")
</pallas_src>

<mosaic_0001>
module attributes {stable_mosaic.version = 11 : i64} {
  func.func @wrapped_model_kernel(%arg0: i32, %arg1: memref<2x4x256xf32, #tpu.memory_space<vmem>>, %arg2: memref<4x32x1xf32, #tpu.memory_space<vmem>>, %arg3: memref<1x32x1xf32, #tpu.memory_space<vmem>>, %arg4: memref<1x32x1xf32, #tpu.memory_space<vmem>>, %arg5: memref<1x32x128xf32, #tpu.memory_space<vmem>>, %arg6: memref<1x1x128xf32, #tpu.memory_space<vmem>>, %arg7: memref<2x128xf32, #tpu.memory_space<vmem>>, %arg8: memref<2x256xf32, #tpu.memory_space<vmem>>) attributes {dimension_semantics = [#tpu.dimension_semantics<arbitrary>], iteration_bounds = array<i64: 1>, scalar_prefetch = 0 : i64, scratch_operands = 0 : i64, tpu.core_type = #tpu.core_type<tc>, window_params = [{pipeline_mode = #tpu.pipeline_mode<synchronous>, transform_indices = @transform_0, window_bounds = array<i64: 2, 4, 256>}, {pipeline_mode = #tpu.pipeline_mode<synchronous>, transform_indices = @transform_1, window_bounds = array<i64: 4, 32, 1>}, {pipeline_mode = #tpu.pipeline_mode<synchronous>, transform_indices = @transform_2, window_bounds = array<i64: 1, 32, 1>}, {pipeline_mode = #tpu.pipeline_mode<synchronous>, transform_indices = @transform_3, window_bounds = array<i64: 1, 32, 1>}, {pipeline_mode = #tpu.pipeline_mode<synchronous>, transform_indices = @transform_4, window_bounds = array<i64: 1, 32, 128>}, {pipeline_mode = #tpu.pipeline_mode<synchronous>, transform_indices = @transform_5, window_bounds = array<i64: 1, 1, 128>}, {pipeline_mode = #tpu.pipeline_mode<synchronous>, transform_indices = @transform_6, window_bounds = array<i64: 2, 128>}, {pipeline_mode = #tpu.pipeline_mode<synchronous>, transform_indices = @transform_7, window_bounds = array<i64: 2, 256>}]} {
    %c0 = arith.constant 0 : index
    %c0_0 = arith.constant 0 : index
    %c0_1 = arith.constant 0 : index
    %0 = vector.load %arg1[%c0, %c0_0, %c0_1] : memref<2x4x256xf32, #tpu.memory_space<vmem>>, vector<2x4x256xf32>
    %c0_2 = arith.constant 0 : index
    %c0_3 = arith.constant 0 : index
    %c0_4 = arith.constant 0 : index
    %1 = vector.load %arg2[%c0_2, %c0_3, %c0_4] : memref<4x32x1xf32, #tpu.memory_space<vmem>>, vector<4x32x1xf32>
    %c0_5 = arith.constant 0 : index
    %c0_6 = arith.constant 0 : index
    %c0_7 = arith.constant 0 : index
    %2 = vector.load %arg3[%c0_5, %c0_6, %c0_7] : memref<1x32x1xf32, #tpu.memory_space<vmem>>, vector<1x32x1xf32>
    %3 = vector.extract_strided_slice %1 {offsets = [0, 0, 0], sizes = [1, 32, 1], strides = [1, 1, 1]} : vector<4x32x1xf32> to vector<1x32x1xf32>
    %4 = vector.extract_strided_slice %0 {offsets = [0, 0, 0], sizes = [2, 1, 256], strides = [1, 1, 1]} : vector<2x4x256xf32> to vector<2x1x256xf32>
    %5 = vector.broadcast %3 : vector<1x32x1xf32> to vector<2x32x256xf32>
    %6 = vector.broadcast %4 : vector<2x1x256xf32> to vector<2x32x256xf32>
    %7 = arith.mulf %5, %6 : vector<2x32x256xf32>
    %8 = vector.broadcast %2 : vector<1x32x1xf32> to vector<2x32x256xf32>
    %9 = arith.addf %8, %7 : vector<2x32x256xf32>
    %10 = vector.extract_strided_slice %1 {offsets = [1, 0, 0], sizes = [1, 32, 1], strides = [1, 1, 1]} : vector<4x32x1xf32> to vector<1x32x1xf32>
    %11 = vector.extract_strided_slice %0 {offsets = [0, 1, 0], sizes = [2, 1, 256], strides = [1, 1, 1]} : vector<2x4x256xf32> to vector<2x1x256xf32>
    %12 = vector.broadcast %10 : vector<1x32x1xf32> to vector<2x32x256xf32>
    %13 = vector.broadcast %11 : vector<2x1x256xf32> to vector<2x32x256xf32>
    %14 = arith.mulf %12, %13 : vector<2x32x256xf32>
    %15 = arith.addf %9, %14 : vector<2x32x256xf32>
    %16 = vector.extract_strided_slice %1 {offsets = [2, 0, 0], sizes = [1, 32, 1], strides = [1, 1, 1]} : vector<4x32x1xf32> to vector<1x32x1xf32>
    %17 = vector.extract_strided_slice %0 {offsets = [0, 2, 0], sizes = [2, 1, 256], strides = [1, 1, 1]} : vector<2x4x256xf32> to vector<2x1x256xf32>
    %18 = vector.broadcast %16 : vector<1x32x1xf32> to vector<2x32x256xf32>
    %19 = vector.broadcast %17 : vector<2x1x256xf32> to vector<2x32x256xf32>
    %20 = arith.mulf %18, %19 : vector<2x32x256xf32>
    %21 = arith.addf %15, %20 : vector<2x32x256xf32>
    %22 = vector.extract_strided_slice %1 {offsets = [3, 0, 0], sizes = [1, 32, 1], strides = [1, 1, 1]} : vector<4x32x1xf32> to vector<1x32x1xf32>
    %23 = vector.extract_strided_slice %0 {offsets = [0, 3, 0], sizes = [2, 1, 256], strides = [1, 1, 1]} : vector<2x4x256xf32> to vector<2x1x256xf32>
    %24 = vector.broadcast %22 : vector<1x32x1xf32> to vector<2x32x256xf32>
    %25 = vector.broadcast %23 : vector<2x1x256xf32> to vector<2x32x256xf32>
    %26 = arith.mulf %24, %25 : vector<2x32x256xf32>
    %27 = arith.addf %21, %26 : vector<2x32x256xf32>
    %cst = arith.constant 0.000000e+00 : f32
    %28 = vector.broadcast %cst : f32 to vector<2x32x256xf32>
    %29 = arith.maximumf %27, %28 : vector<2x32x256xf32>
    %c0_8 = arith.constant 0 : index
    %c0_9 = arith.constant 0 : index
    %c0_10 = arith.constant 0 : index
    %30 = vector.load %arg4[%c0_8, %c0_9, %c0_10] : memref<1x32x1xf32, #tpu.memory_space<vmem>>, vector<1x32x1xf32>
    %31 = vector.broadcast %30 : vector<1x32x1xf32> to vector<2x32x256xf32>
    %32 = arith.mulf %31, %29 : vector<2x32x256xf32>
    %cst_11 = arith.constant dense<0.000000e+00> : vector<2x256xf32>
    %33 = vector.multi_reduction <add>, %32, %cst_11 [1] : vector<2x32x256xf32> to vector<2x256xf32>
    %34 = vector.shape_cast %33 : vector<2x256xf32> to vector<2x1x256xf32>
    %cst_12 = arith.constant dense<0xFF800000> : vector<2x1xf32>
    %35 = vector.multi_reduction <maximumf>, %34, %cst_12 [2] : vector<2x1x256xf32> to vector<2x1xf32>
    %36 = vector.shape_cast %35 : vector<2x1xf32> to vector<2x1x1xf32>
    %37 = vector.broadcast %36 : vector<2x1x1xf32> to vector<2x1x256xf32>
    %38 = arith.subf %34, %37 : vector<2x1x256xf32>
    %39 = math.exp %38 : vector<2x1x256xf32>
    %cst_13 = arith.constant dense<0.000000e+00> : vector<2x1xf32>
    %40 = vector.multi_reduction <add>, %39, %cst_13 [2] : vector<2x1x256xf32> to vector<2x1xf32>
    %41 = vector.shape_cast %40 : vector<2x1xf32> to vector<2x1x1xf32>
    %42 = vector.broadcast %41 : vector<2x1x1xf32> to vector<2x1x256xf32>
    %43 = arith.divf %39, %42 : vector<2x1x256xf32>
    %44 = vector.broadcast %43 : vector<2x1x256xf32> to vector<2x32x256xf32>
    %45 = arith.mulf %44, %29 : vector<2x32x256xf32>
    %cst_14 = arith.constant dense<0.000000e+00> : vector<2x32xf32>
    %46 = vector.multi_reduction <add>, %45, %cst_14 [2] : vector<2x32x256xf32> to vector<2x32xf32>
    %47 = vector.shape_cast %46 : vector<2x32xf32> to vector<2x32x1xf32>
    %c0_15 = arith.constant 0 : index
    %c0_16 = arith.constant 0 : index
    %c0_17 = arith.constant 0 : index
    %48 = vector.load %arg5[%c0_15, %c0_16, %c0_17] : memref<1x32x128xf32, #tpu.memory_space<vmem>>, vector<1x32x128xf32>
    %49 = vector.broadcast %47 : vector<2x32x1xf32> to vector<2x32x128xf32>
    %50 = vector.broadcast %48 : vector<1x32x128xf32> to vector<2x32x128xf32>
    %51 = arith.mulf %49, %50 : vector<2x32x128xf32>
    %cst_18 = arith.constant dense<0.000000e+00> : vector<2x128xf32>
    %52 = vector.multi_reduction <add>, %51, %cst_18 [1] : vector<2x32x128xf32> to vector<2x128xf32>
    %53 = vector.shape_cast %52 : vector<2x128xf32> to vector<2x1x128xf32>
    %c0_19 = arith.constant 0 : index
    %c0_20 = arith.constant 0 : index
    %c0_21 = arith.constant 0 : index
    %54 = vector.load %arg6[%c0_19, %c0_20, %c0_21] : memref<1x1x128xf32, #tpu.memory_space<vmem>>, vector<1x1x128xf32>
    %55 = vector.broadcast %54 : vector<1x1x128xf32> to vector<2x1x128xf32>
    %56 = arith.addf %53, %55 : vector<2x1x128xf32>
    %57 = vector.extract_strided_slice %56 {offsets = [0, 0, 0], sizes = [1, 1, 128], strides = [1, 1, 1]} : vector<2x1x128xf32> to vector<1x1x128xf32>
    %58 = vector.shape_cast %57 : vector<1x1x128xf32> to vector<1x128xf32>
    %c0_22 = arith.constant 0 : index
    %c0_23 = arith.constant 0 : index
    %59 = vector.load %arg7[%c0_22, %c0_23] : memref<2x128xf32, #tpu.memory_space<vmem>>, vector<1x128xf32>
    tpu.vector_store %arg7[%c0_22, %c0_23], %58 {strides = array<i32>} : memref<2x128xf32, #tpu.memory_space<vmem>>, vector<1x128xf32>,
    %60 = vector.extract_strided_slice %43 {offsets = [0, 0, 0], sizes = [1, 1, 256], strides = [1, 1, 1]} : vector<2x1x256xf32> to vector<1x1x256xf32>
    %61 = vector.shape_cast %60 : vector<1x1x256xf32> to vector<1x256xf32>
    %c0_24 = arith.constant 0 : index
    %c0_25 = arith.constant 0 : index
    %62 = vector.load %arg8[%c0_24, %c0_25] : memref<2x256xf32, #tpu.memory_space<vmem>>, vector<1x256xf32>
    tpu.vector_store %arg8[%c0_24, %c0_25], %61 {strides = array<i32>} : memref<2x256xf32, #tpu.memory_space<vmem>>, vector<1x256xf32>,
    %63 = vector.extract_strided_slice %56 {offsets = [1, 0, 0], sizes = [1, 1, 128], strides = [1, 1, 1]} : vector<2x1x128xf32> to vector<1x1x128xf32>
    %64 = vector.shape_cast %63 : vector<1x1x128xf32> to vector<1x128xf32>
    %c1 = arith.constant 1 : index
    %c0_26 = arith.constant 0 : index
    %65 = vector.load %arg7[%c1, %c0_26] : memref<2x128xf32, #tpu.memory_space<vmem>>, vector<1x128xf32>
    tpu.vector_store %arg7[%c1, %c0_26], %64 {strides = array<i32>} : memref<2x128xf32, #tpu.memory_space<vmem>>, vector<1x128xf32>,
    %66 = vector.extract_strided_slice %43 {offsets = [1, 0, 0], sizes = [1, 1, 256], strides = [1, 1, 1]} : vector<2x1x256xf32> to vector<1x1x256xf32>
    %67 = vector.shape_cast %66 : vector<1x1x256xf32> to vector<1x256xf32>
    %c1_27 = arith.constant 1 : index
    %c0_28 = arith.constant 0 : index
    %68 = vector.load %arg8[%c1_27, %c0_28] : memref<2x256xf32, #tpu.memory_space<vmem>>, vector<1x256xf32>
    tpu.vector_store %arg8[%c1_27, %c0_28], %67 {strides = array<i32>} : memref<2x256xf32, #tpu.memory_space<vmem>>, vector<1x256xf32>,
    return
  }
  func.func @transform_0(%arg0: i32) -> (i32, i32, i32) {
    %c0_i32 = arith.constant 0 : i32
    %c0_i32_0 = arith.constant 0 : i32
    %c0_i32_1 = arith.constant 0 : i32
    %c0_i32_2 = arith.constant 0 : i32
    return %c0_i32, %c0_i32_0, %c0_i32_1 : i32, i32, i32
  }
  func.func @transform_1(%arg0: i32) -> (i32, i32, i32) {
    %c0_i32 = arith.constant 0 : i32
    %c0_i32_0 = arith.constant 0 : i32
    %c0_i32_1 = arith.constant 0 : i32
    %c0_i32_2 = arith.constant 0 : i32
    return %c0_i32, %c0_i32_0, %c0_i32_1 : i32, i32, i32
  }
  func.func @transform_2(%arg0: i32) -> (i32, i32, i32) {
    %c0_i32 = arith.constant 0 : i32
    %c0_i32_0 = arith.constant 0 : i32
    %c0_i32_1 = arith.constant 0 : i32
    %c0_i32_2 = arith.constant 0 : i32
    return %c0_i32, %c0_i32_0, %c0_i32_1 : i32, i32, i32
  }
  func.func @transform_3(%arg0: i32) -> (i32, i32, i32) {
    %c0_i32 = arith.constant 0 : i32
    %c0_i32_0 = arith.constant 0 : i32
    %c0_i32_1 = arith.constant 0 : i32
    %c0_i32_2 = arith.constant 0 : i32
    return %c0_i32, %c0_i32_0, %c0_i32_1 : i32, i32, i32
  }
  func.func @transform_4(%arg0: i32) -> (i32, i32, i32) {
    %c0_i32 = arith.constant 0 : i32
    %c0_i32_0 = arith.constant 0 : i32
    %c0_i32_1 = arith.constant 0 : i32
    %c0_i32_2 = arith.constant 0 : i32
    return %c0_i32, %c0_i32_0, %c0_i32_1 : i32, i32, i32
  }
  func.func @transform_5(%arg0: i32) -> (i32, i32, i32) {
    %c0_i32 = arith.constant 0 : i32
    %c0_i32_0 = arith.constant 0 : i32
    %c0_i32_1 = arith.constant 0 : i32
    %c0_i32_2 = arith.constant 0 : i32
    return %c0_i32, %c0_i32_0, %c0_i32_1 : i32, i32, i32
  }
  func.func @transform_6(%arg0: i32) -> (i32, i32) {
    %c0_i32 = arith.constant 0 : i32
    %c0_i32_0 = arith.constant 0 : i32
    %c0_i32_1 = arith.constant 0 : i32
    return %c0_i32, %c0_i32_0 : i32, i32
  }
  func.func @transform_7(%arg0: i32) -> (i32, i32) {
    %c0_i32 = arith.constant 0 : i32
    %c0_i32_0 = arith.constant 0 : i32
    %c0_i32_1 = arith.constant 0 : i32
    return %c0_i32, %c0_i32_0 : i32, i32
  }
}

</mosaic_0001>

<llo_original>
// kernel: tpu_custom_call.1
$region0: #{tpu_custom_call.1}
  #allocation0 [shape = 'u32[]', space=smem, size = 0x4, offset = 0x4, fixed_abs, tag = 'smem constant byte address 0x4 - core index']
  #allocation1 [shape = 'u32[144,128]{1,0:T(1,128)}', space=vmem, size = 0x12000, scoped, tag = 'internal scratch']
  %s0 = inlined_call_operand.vmem [shape: f32[2,4,256], index: 0, kind: input, shape index: {}]
  %s1 = inlined_call_operand.vmem [shape: f32[4,32,1], index: 1, kind: input, shape index: {}]
  %s2 = inlined_call_operand.vmem [shape: f32[1,32,1], index: 2, kind: input, shape index: {}]
  %s3 = inlined_call_operand.vmem [shape: f32[1,32,1], index: 3, kind: input, shape index: {}]
  %s4 = inlined_call_operand.vmem [shape: f32[1,32,128], index: 4, kind: input, shape index: {}]
  %s5 = inlined_call_operand.vmem [shape: f32[1,1,128], index: 5, kind: input, shape index: {}]
  %s6 = inlined_call_operand.hbm [shape: f32[2,128], index: 6, kind: output, shape index: {0}]
  %s7 = inlined_call_operand.hbm [shape: f32[2,256], index: 7, kind: output, shape index: {1}]
  %8 = xla_tuple %s6, %s7
  %s9 = sld [smem:[#allocation0]]
  $region42: #{tpu_custom_call.1} parent=0
    _
  %s11 = ssub.s32 1, %s9
  %s12 = scalar_select 0, %s11, %s9
  $region1: #{tpu_custom_call.1} parent=0
    #allocation2 [shape = 'u8[1024]{0}', space=vmem, size = 0x400, scoped, tag = 'output window, operand 0, single buffered']
    #allocation3 [shape = 's32[1]{0}', space=sflag, size = 0x4, scoped, tag = 'scoped memory for tpu_custom_call.1']
    #allocation4 [shape = 'u8[2048]{0}', space=vmem, size = 0x800, scoped, tag = 'output window, operand 1, single buffered']
    #allocation5 [shape = 's32[1]{0}', space=sflag, size = 0x4, scoped, tag = 'scoped memory for tpu_custom_call.1']
    %13 = vsyncpa [#allocation3], 0
    %14 = vsyncpa [#allocation5], 0
    // Predicated region
    $region2: #{tpu_custom_call.1} parent=1 // pred_check
      _
    $region3: #{tpu_custom_call.1} parent=1 // pred_check_branch
      %16 = sbr.rel (0) target = $region5
    $region4: #{tpu_custom_call.1} parent=1 // pred_region
      _
    $region5: #{tpu_custom_call.1} parent=1 // pred_fallthru
      _
    // Predicated region
    $region6: #{tpu_custom_call.1} parent=1 // pred_check
      _
    $region7: #{tpu_custom_call.1} parent=1 // pred_check_branch
      %18 = sbr.rel (0) target = $region9
    $region8: #{tpu_custom_call.1} parent=1 // pred_region
      _
    $region9: #{tpu_custom_call.1} parent=1 // pred_fallthru
      _
    // Predicated region
    $region10: #{tpu_custom_call.1} parent=1 // pred_check
      _
    $region11: #{tpu_custom_call.1} parent=1 // pred_check_branch
      %20 = sbr.rel (0) target = $region13
    $region12: #{tpu_custom_call.1} parent=1 // pred_region
      _
    $region13: #{tpu_custom_call.1} parent=1 // pred_fallthru
      _
    // Predicated region
    $region14: #{tpu_custom_call.1} parent=1 // pred_check
      _
    $region15: #{tpu_custom_call.1} parent=1 // pred_check_branch
      %22 = sbr.rel (0) target = $region17
    $region16: #{tpu_custom_call.1} parent=1 // pred_region
      _
    $region17: #{tpu_custom_call.1} parent=1 // pred_fallthru
      _
    // Predicated region
    $region18: #{tpu_custom_call.1} parent=1 // pred_check
      _
    $region19: #{tpu_custom_call.1} parent=1 // pred_check_branch
      %24 = sbr.rel (0) target = $region21
    $region20: #{tpu_custom_call.1} parent=1 // pred_region
      _
    $region21: #{tpu_custom_call.1} parent=1 // pred_fallthru
      _
    // Predicated region
    $region22: #{tpu_custom_call.1} parent=1 // pred_check
      _
    $region23: #{tpu_custom_call.1} parent=1 // pred_check_branch
      %26 = sbr.rel (0) target = $region25
    $region24: #{tpu_custom_call.1} parent=1 // pred_region
      _
    $region25: #{tpu_custom_call.1} parent=1 // pred_fallthru
      _
    %v27 = vld [vmem:[%s0] sm:$0xff]
    %v28 = vld [vmem:[%s0 + $0x8] sm:$0xff]
    %v29 = vld [vmem:[%s1] sm:$0xff]
    %v30 = vld [vmem:[%s1 + $0x8] sm:$0xff]
    %v31 = vld [vmem:[%s1 + $0x10] sm:$0xff]
    %v32 = vld [vmem:[%s1 + $0x18] sm:$0xff]
    %v33 = vld [vmem:[%s1 + $0x20] sm:$0xff]
    %v34 = vld [vmem:[%s1 + $0x28] sm:$0xff]
    %v35 = vld [vmem:[%s1 + $0x30] sm:$0xff]
    %v36 = vld [vmem:[%s1 + $0x38] sm:$0xff]
    %v37 = vld [vmem:[%s1 + $0x40] sm:$0xff]
    %v38 = vld [vmem:[%s1 + $0x48] sm:$0xff]
    %v39 = vld [vmem:[%s1 + $0x50] sm:$0xff]
    %v40 = vld [vmem:[%s1 + $0x58] sm:$0xff]
    %v41 = vld [vmem:[%s1 + $0x60] sm:$0xff]
    %v42 = vld [vmem:[%s1 + $0x68] sm:$0xff]
    %v43 = vld [vmem:[%s1 + $0x70] sm:$0xff]
    %v44 = vld [vmem:[%s1 + $0x78] sm:$0xff]
    %v45 = vld [vmem:[%s2] sm:$0xff]
    %v46 = vld [vmem:[%s2 + $0x8] sm:$0xff]
    %v47 = vld [vmem:[%s2 + $0x10] sm:$0xff]
    %v48 = vld [vmem:[%s2 + $0x18] sm:$0xff]
    %50 = vset.pattern.permute.xlu0 0
    %51 = vperm.xlu0 %50, %v29
    %v52 = vpop.permute.xlu0 %51
    %55 = vset.pattern.permute.xlu0 0
    %56 = vperm.xlu0 %55, %v30
    %v57 = vpop.permute.xlu0 %56
    %60 = vset.pattern.permute.xlu0 0
    %61 = vperm.xlu0 %60, %v31
    %v62 = vpop.permute.xlu0 %61
    %65 = vset.pattern.permute.xlu0 0
    %66 = vperm.xlu0 %65, %v32
    %v67 = vpop.permute.xlu0 %66
    %v71 = vlaneseq
    %v72 = vshrl.u32 %v71, 7
    %v73 = vsub.s32 0, %v72
    %v74 = vrot.slane %v27, %v73
    %v75 = vlaneseq
    %v76 = vshrl.u32 %v75, 7
    %v77 = vsub.s32 4, %v76
    %v78 = vrot.slane %v27, %v77
    %v79 = vlaneseq
    %v80 = vshrl.u32 %v79, 7
    %v81 = vsub.s32 0, %v80
    %v82 = vrot.slane %v28, %v81
    %v83 = vlaneseq
    %v84 = vshrl.u32 %v83, 7
    %v85 = vsub.s32 4, %v84
    %v86 = vrot.slane %v28, %v85
    %v91 = vlaneseq
    %v92 = vshrl.u32 %v91, 7
    %v93 = vsub.s32 0, %v92
    %v94 = vrot.slane %v74, %v93
    %v95 = vlaneseq
    %v96 = vshrl.u32 %v95, 7
    %v97 = vsub.s32 0, %v96
    %v98 = vrot.slane %v78, %v97
    %v99 = vlaneseq
    %v100 = vshrl.u32 %v99, 7
    %v101 = vsub.s32 0, %v100
    %v102 = vrot.slane %v82, %v101
    %v103 = vlaneseq
    %v104 = vshrl.u32 %v103, 7
    %v105 = vsub.s32 0, %v104
    %v106 = vrot.slane %v86, %v105
    %v107 = vmul.f32 %v52, %v94
    %v108 = vmul.f32 %v52, %v98
    %v109 = vmul.f32 %v57, %v94
    %v110 = vmul.f32 %v57, %v98
    %v111 = vmul.f32 %v62, %v94
    %v112 = vmul.f32 %v62, %v98
    %v113 = vmul.f32 %v67, %v94
    %v114 = vmul.f32 %v67, %v98
    %v115 = vmul.f32 %v52, %v102
    %v116 = vmul.f32 %v52, %v106
    %v117 = vmul.f32 %v57, %v102
    %v118 = vmul.f32 %v57, %v106
    %v119 = vmul.f32 %v62, %v102
    %v120 = vmul.f32 %v62, %v106
    %v121 = vmul.f32 %v67, %v102
    %v122 = vmul.f32 %v67, %v106
    %124 = vset.pattern.permute.xlu0 0
    %125 = vperm.xlu0 %124, %v45
    %v126 = vpop.permute.xlu0 %125
    %129 = vset.pattern.permute.xlu0 0
    %130 = vperm.xlu0 %129, %v46
    %v131 = vpop.permute.xlu0 %130
    %134 = vset.pattern.permute.xlu0 0
    %135 = vperm.xlu0 %134, %v47
    %v136 = vpop.permute.xlu0 %135
    %139 = vset.pattern.permute.xlu0 0
    %140 = vperm.xlu0 %139, %v48
    %v141 = vpop.permute.xlu0 %140
    %v143 = vadd.f32 %v126, %v107
    %v144 = vadd.f32 %v126, %v108
    %v145 = vadd.f32 %v131, %v109
    %v146 = vadd.f32 %v131, %v110
    %v147 = vadd.f32 %v136, %v111
    %v148 = vadd.f32 %v136, %v112
    %v149 = vadd.f32 %v141, %v113
    %v150 = vadd.f32 %v141, %v114
    %v151 = vadd.f32 %v126, %v115
    %v152 = vadd.f32 %v126, %v116
    %v153 = vadd.f32 %v131, %v117
    %v154 = vadd.f32 %v131, %v118
    %v155 = vadd.f32 %v136, %v119
    %v156 = vadd.f32 %v136, %v120
    %v157 = vadd.f32 %v141, %v121
    %v158 = vadd.f32 %v141, %v122
    %160 = vset.pattern.permute.xlu0 0
    %161 = vperm.xlu0 %160, %v33
    %v162 = vpop.permute.xlu0 %161
    %165 = vset.pattern.permute.xlu0 0
    %166 = vperm.xlu0 %165, %v34
    %v167 = vpop.permute.xlu0 %166
    %170 = vset.pattern.permute.xlu0 0
    %171 = vperm.xlu0 %170, %v35
    %v172 = vpop.permute.xlu0 %171
    %175 = vset.pattern.permute.xlu0 0
    %176 = vperm.xlu0 %175, %v36
    %v177 = vpop.permute.xlu0 %176
    %v179 = vlaneseq
    %v180 = vshrl.u32 %v179, 7
    %v181 = vsub.s32 1, %v180
    %v182 = vrot.slane %v27, %v181
    %v183 = vlaneseq
    %v184 = vshrl.u32 %v183, 7
    %v185 = vsub.s32 5, %v184
    %v186 = vrot.slane %v27, %v185
    %v187 = vlaneseq
    %v188 = vshrl.u32 %v187, 7
    %v189 = vsub.s32 1, %v188
    %v190 = vrot.slane %v28, %v189
    %v191 = vlaneseq
    %v192 = vshrl.u32 %v191, 7
    %v193 = vsub.s32 5, %v192
    %v194 = vrot.slane %v28, %v193
    %v199 = vlaneseq
    %v200 = vshrl.u32 %v199, 7
    %v201 = vsub.s32 1, %v200
    %v202 = vrot.slane %v182, %v201
    %v203 = vlaneseq
    %v204 = vshrl.u32 %v203, 7
    %v205 = vsub.s32 1, %v204
    %v206 = vrot.slane %v186, %v205
    %v207 = vlaneseq
    %v208 = vshrl.u32 %v207, 7
    %v209 = vsub.s32 1, %v208
    %v210 = vrot.slane %v190, %v209
    %v211 = vlaneseq
    %v212 = vshrl.u32 %v211, 7
    %v213 = vsub.s32 1, %v212
    %v214 = vrot.slane %v194, %v213
    %v215 = vmul.f32 %v162, %v202
    %v216 = vmul.f32 %v162, %v206
    %v217 = vmul.f32 %v167, %v202
    %v218 = vmul.f32 %v167, %v206
    %v219 = vmul.f32 %v172, %v202
    %v220 = vmul.f32 %v172, %v206
    %v221 = vmul.f32 %v177, %v202
    %v222 = vmul.f32 %v177, %v206
    %v223 = vmul.f32 %v162, %v210
    %v224 = vmul.f32 %v162, %v214
    %v225 = vmul.f32 %v167, %v210
    %v226 = vmul.f32 %v167, %v214
    %v227 = vmul.f32 %v172, %v210
    %v228 = vmul.f32 %v172, %v214
    %v229 = vmul.f32 %v177, %v210
    %v230 = vmul.f32 %v177, %v214
    %v231 = vadd.f32 %v143, %v215
    %v232 = vadd.f32 %v144, %v216
    %v233 = vadd.f32 %v145, %v217
    %v234 = vadd.f32 %v146, %v218
    %v235 = vadd.f32 %v147, %v219
    %v236 = vadd.f32 %v148, %v220
    %v237 = vadd.f32 %v149, %v221
    %v238 = vadd.f32 %v150, %v222
    %v239 = vadd.f32 %v151, %v223
    %v240 = vadd.f32 %v152, %v224
    %v241 = vadd.f32 %v153, %v225
    %v242 = vadd.f32 %v154, %v226
    %v243 = vadd.f32 %v155, %v227
    %v244 = vadd.f32 %v156, %v228
    %v245 = vadd.f32 %v157, %v229
    %v246 = vadd.f32 %v158, %v230
    %248 = vset.pattern.permute.xlu0 0
    %249 = vperm.xlu0 %248, %v37
    %v250 = vpop.permute.xlu0 %249
    %253 = vset.pattern.permute.xlu0 0
    %254 = vperm.xlu0 %253, %v38
    %v255 = vpop.permute.xlu0 %254
    %258 = vset.pattern.permute.xlu0 0
    %259 = vperm.xlu0 %258, %v39
    %v260 = vpop.permute.xlu0 %259
    %263 = vset.pattern.permute.xlu0 0
    %264 = vperm.xlu0 %263, %v40
    %v265 = vpop.permute.xlu0 %264
    %v267 = vlaneseq
    %v268 = vshrl.u32 %v267, 7
    %v269 = vsub.s32 2, %v268
    %v270 = vrot.slane %v27, %v269
    %v271 = vlaneseq
    %v272 = vshrl.u32 %v271, 7
    %v273 = vsub.s32 6, %v272
    %v274 = vrot.slane %v27, %v273
    %v275 = vlaneseq
    %v276 = vshrl.u32 %v275, 7
    %v277 = vsub.s32 2, %v276
    %v278 = vrot.slane %v28, %v277
    %v279 = vlaneseq
    %v280 = vshrl.u32 %v279, 7
    %v281 = vsub.s32 6, %v280
    %v282 = vrot.slane %v28, %v281
    %v287 = vlaneseq
    %v288 = vshrl.u32 %v287, 7
    %v289 = vsub.s32 2, %v288
    %v290 = vrot.slane %v270, %v289
    %v291 = vlaneseq
    %v292 = vshrl.u32 %v291, 7
    %v293 = vsub.s32 2, %v292
    %v294 = vrot.slane %v274, %v293
    %v295 = vlaneseq
    %v296 = vshrl.u32 %v295, 7
    %v297 = vsub.s32 2, %v296
    %v298 = vrot.slane %v278, %v297
    %v299 = vlaneseq
    %v300 = vshrl.u32 %v299, 7
    %v301 = vsub.s32 2, %v300
    %v302 = vrot.slane %v282, %v301
    %v303 = vmul.f32 %v250, %v290
    %v304 = vmul.f32 %v250, %v294
    %v305 = vmul.f32 %v255, %v290
    %v306 = vmul.f32 %v255, %v294
    %v307 = vmul.f32 %v260, %v290
    %v308 = vmul.f32 %v260, %v294
    %v309 = vmul.f32 %v265, %v290
    %v310 = vmul.f32 %v265, %v294
    %v311 = vmul.f32 %v250, %v298
    %v312 = vmul.f32 %v250, %v302
    %v313 = vmul.f32 %v255, %v298
    %v314 = vmul.f32 %v255, %v302
    %v315 = vmul.f32 %v260, %v298
    %v316 = vmul.f32 %v260, %v302
    %v317 = vmul.f32 %v265, %v298
    %v318 = vmul.f32 %v265, %v302
    %v319 = vadd.f32 %v231, %v303
    %v320 = vadd.f32 %v232, %v304
    %v321 = vadd.f32 %v233, %v305
    %v322 = vadd.f32 %v234, %v306
    %v323 = vadd.f32 %v235, %v307
    %v324 = vadd.f32 %v236, %v308
    %v325 = vadd.f32 %v237, %v309
    %v326 = vadd.f32 %v238, %v310
    %v327 = vadd.f32 %v239, %v311
    %v328 = vadd.f32 %v240, %v312
    %v329 = vadd.f32 %v241, %v313
    %v330 = vadd.f32 %v242, %v314
    %v331 = vadd.f32 %v243, %v315
    %v332 = vadd.f32 %v244, %v316
    %v333 = vadd.f32 %v245, %v317
    %v334 = vadd.f32 %v246, %v318
    %336 = vset.pattern.permute.xlu0 0
    %337 = vperm.xlu0 %336, %v41
    %v338 = vpop.permute.xlu0 %337
    %341 = vset.pattern.permute.xlu0 0
    %342 = vperm.xlu0 %341, %v42
    %v343 = vpop.permute.xlu0 %342
    %346 = vset.pattern.permute.xlu0 0
    %347 = vperm.xlu0 %346, %v43
    %v348 = vpop.permute.xlu0 %347
    %351 = vset.pattern.permute.xlu0 0
    %352 = vperm.xlu0 %351, %v44
    %v353 = vpop.permute.xlu0 %352
    %v355 = vlaneseq
    %v356 = vshrl.u32 %v355, 7
    %v357 = vsub.s32 3, %v356
    %v358 = vrot.slane %v27, %v357
    %v359 = vlaneseq
    %v360 = vshrl.u32 %v359, 7
    %v361 = vsub.s32 7, %v360
    %v362 = vrot.slane %v27, %v361
    %v363 = vlaneseq
    %v364 = vshrl.u32 %v363, 7
    %v365 = vsub.s32 3, %v364
    %v366 = vrot.slane %v28, %v365
    %v367 = vlaneseq
    %v368 = vshrl.u32 %v367, 7
    %v369 = vsub.s32 7, %v368
    %v370 = vrot.slane %v28, %v369
    %v375 = vlaneseq
    %v376 = vshrl.u32 %v375, 7
    %v377 = vsub.s32 3, %v376
    %v378 = vrot.slane %v358, %v377
    %v379 = vlaneseq
    %v380 = vshrl.u32 %v379, 7
    %v381 = vsub.s32 3, %v380
    %v382 = vrot.slane %v362, %v381
    %v383 = vlaneseq
    %v384 = vshrl.u32 %v383, 7
    %v385 = vsub.s32 3, %v384
    %v386 = vrot.slane %v366, %v385
    %v387 = vlaneseq
    %v388 = vshrl.u32 %v387, 7
    %v389 = vsub.s32 3, %v388
    %v390 = vrot.slane %v370, %v389
    %v391 = vmul.f32 %v338, %v378
    %v392 = vmul.f32 %v338, %v382
    %v393 = vmul.f32 %v343, %v378
    %v394 = vmul.f32 %v343, %v382
    %v395 = vmul.f32 %v348, %v378
    %v396 = vmul.f32 %v348, %v382
    %v397 = vmul.f32 %v353, %v378
    %v398 = vmul.f32 %v353, %v382
    %v399 = vmul.f32 %v338, %v386
    %v400 = vmul.f32 %v338, %v390
    %v401 = vmul.f32 %v343, %v386
    %v402 = vmul.f32 %v343, %v390
    %v403 = vmul.f32 %v348, %v386
    %v404 = vmul.f32 %v348, %v390
    %v405 = vmul.f32 %v353, %v386
    %v406 = vmul.f32 %v353, %v390
    %v407 = vadd.f32 %v319, %v391
    %v408 = vadd.f32 %v320, %v392
    %v409 = vadd.f32 %v321, %v393
    %v410 = vadd.f32 %v322, %v394
    %v411 = vadd.f32 %v323, %v395
    %v412 = vadd.f32 %v324, %v396
    %v413 = vadd.f32 %v325, %v397
    %v414 = vadd.f32 %v326, %v398
    %v415 = vadd.f32 %v327, %v399
    %v416 = vadd.f32 %v328, %v400
    %v417 = vadd.f32 %v329, %v401
    %v418 = vadd.f32 %v330, %v402
    %v419 = vadd.f32 %v331, %v403
    %v420 = vadd.f32 %v332, %v404
    %v421 = vadd.f32 %v333, %v405
    %v422 = vadd.f32 %v334, %v406
    %v423 = vmax.f32 %v407, 0.0
    %v424 = vmax.f32 %v408, 0.0
    %v425 = vmax.f32 %v409, 0.0
    %v426 = vmax.f32 %v410, 0.0
    %v427 = vmax.f32 %v411, 0.0
    %v428 = vmax.f32 %v412, 0.0
    %v429 = vmax.f32 %v413, 0.0
    %v430 = vmax.f32 %v414, 0.0
    %v431 = vmax.f32 %v415, 0.0
    %v432 = vmax.f32 %v416, 0.0
    %v433 = vmax.f32 %v417, 0.0
    %v434 = vmax.f32 %v418, 0.0
    %v435 = vmax.f32 %v419, 0.0
    %v436 = vmax.f32 %v420, 0.0
    %v437 = vmax.f32 %v421, 0.0
    %v438 = vmax.f32 %v422, 0.0
    %v439 = vld [vmem:[%s3] sm:$0xff]
    %v440 = vld [vmem:[%s3 + $0x8] sm:$0xff]
    %v441 = vld [vmem:[%s3 + $0x10] sm:$0xff]
    %v442 = vld [vmem:[%s3 + $0x18] sm:$0xff]
    %444 = vset.pattern.permute.xlu0 0
    %445 = vperm.xlu0 %444, %v439
    %v446 = vpop.permute.xlu0 %445
    %449 = vset.pattern.permute.xlu0 0
    %450 = vperm.xlu0 %449, %v440
    %v451 = vpop.permute.xlu0 %450
    %454 = vset.pattern.permute.xlu0 0
    %455 = vperm.xlu0 %454, %v441
    %v456 = vpop.permute.xlu0 %455
    %459 = vset.pattern.permute.xlu0 0
    %460 = vperm.xlu0 %459, %v442
    %v461 = vpop.permute.xlu0 %460
    %v463 = vmul.f32 %v446, %v423
    %v464 = vmul.f32 %v446, %v424
    %v465 = vmul.f32 %v451, %v425
    %v466 = vmul.f32 %v451, %v426
    %v467 = vmul.f32 %v456, %v427
    %v468 = vmul.f32 %v456, %v428
    %v469 = vmul.f32 %v461, %v429
    %v470 = vmul.f32 %v461, %v430
    %v471 = vmul.f32 %v446, %v431
    %v472 = vmul.f32 %v446, %v432
    %v473 = vmul.f32 %v451, %v433
    %v474 = vmul.f32 %v451, %v434
    %v475 = vmul.f32 %v456, %v435
    %v476 = vmul.f32 %v456, %v436
    %v477 = vmul.f32 %v461, %v437
    %v478 = vmul.f32 %v461, %v438
    %v479 = vadd.f32 %v463, %v465
    %v480 = vadd.f32 %v479, %v467
    %v481 = vadd.f32 %v480, %v469
    %v482 = vrot.slane %v481, 4
    %v483 = vadd.f32 %v481, %v482
    %v484 = vrot.slane %v483, 2
    %v485 = vadd.f32 %v483, %v484
    %v486 = vrot.slane %v485, 1
    %v487 = vadd.f32 %v485, %v486
    %v488 = vadd.f32 %v464, %v466
    %v489 = vadd.f32 %v488, %v468
    %v490 = vadd.f32 %v489, %v470
    %v491 = vrot.slane %v490, 4
    %v492 = vadd.f32 %v490, %v491
    %v493 = vrot.slane %v492, 2
    %v494 = vadd.f32 %v492, %v493
    %v495 = vrot.slane %v494, 1
    %v496 = vadd.f32 %v494, %v495
    %v497 = vadd.f32 %v471, %v473
    %v498 = vadd.f32 %v497, %v475
    %v499 = vadd.f32 %v498, %v477
    %v500 = vrot.slane %v499, 4
    %v501 = vadd.f32 %v499, %v500
    %v502 = vrot.slane %v501, 2
    %v503 = vadd.f32 %v501, %v502
    %v504 = vrot.slane %v503, 1
    %v505 = vadd.f32 %v503, %v504
    %v506 = vadd.f32 %v472, %v474
    %v507 = vadd.f32 %v506, %v476
    %v508 = vadd.f32 %v507, %v478
    %v509 = vrot.slane %v508, 4
    %v510 = vadd.f32 %v508, %v509
    %v511 = vrot.slane %v510, 2
    %v512 = vadd.f32 %v510, %v511
    %v513 = vrot.slane %v512, 1
    %v514 = vadd.f32 %v512, %v513
    %v515 = vmax.f32 %v487, %v496
    %516 = vmax.xlane.f32.xlu0 %v515
    %v517 = vpop.xlane.xlu0 %516
    %v518 = vmax.f32 %v505, %v514
    %519 = vmax.xlane.f32.xlu0 %v518
    %v520 = vpop.xlane.xlu0 %519
    %v521 = vsub.f32 %v487, %v517
    %v522 = vsub.f32 %v496, %v517
    %v523 = vsub.f32 %v505, %v520
    %v524 = vsub.f32 %v514, %v520
    %v525 = vmul.f32 %v521, 1.442695
    %v526 = vpow.pop %v525
    %v527 = vmul.f32 %v522, 1.442695
    %v528 = vpow.pop %v527
    %v529 = vmul.f32 %v523, 1.442695
    %v530 = vpow.pop %v529
    %v531 = vmul.f32 %v524, 1.442695
    %v532 = vpow.pop %v531
    %v533 = vadd.f32 %v526, %v528
    %534 = vadd.xlane.f32.xlu0 %v533
    %v535 = vpop.xlane.xlu0 %534
    %v536 = vadd.f32 %v530, %v532
    %537 = vadd.xlane.f32.xlu0 %v536
    %v538 = vpop.xlane.xlu0 %537
    %v539 = vrcp.pop %v535
    %v540 = vmul.f32 %v526, %v539
    %v541 = vmul.f32 %v528, %v539
    %v542 = vrcp.pop %v538
    %v543 = vmul.f32 %v530, %v542
    %v544 = vmul.f32 %v532, %v542
    %v545 = vmul.f32 %v540, %v423
    %v546 = vmul.f32 %v541, %v424
    %v547 = vmul.f32 %v540, %v425
    %v548 = vmul.f32 %v541, %v426
    %v549 = vmul.f32 %v540, %v427
    %v550 = vmul.f32 %v541, %v428
    %v551 = vmul.f32 %v540, %v429
    %v552 = vmul.f32 %v541, %v430
    %v553 = vmul.f32 %v543, %v431
    %v554 = vmul.f32 %v544, %v432
    %v555 = vmul.f32 %v543, %v433
    %v556 = vmul.f32 %v544, %v434
    %v557 = vmul.f32 %v543, %v435
    %v558 = vmul.f32 %v544, %v436
    %v559 = vmul.f32 %v543, %v437
    %v560 = vmul.f32 %v544, %v438
    %v561 = vadd.f32 %v545, %v546
    %562 = vadd.xlane.f32.xlu0 %v561
    %v563 = vpop.xlane.xlu0 %562
    %v564 = vadd.f32 %v547, %v548
    %565 = vadd.xlane.f32.xlu0 %v564
    %v566 = vpop.xlane.xlu0 %565
    %v567 = vadd.f32 %v549, %v550
    %568 = vadd.xlane.f32.xlu0 %v567
    %v569 = vpop.xlane.xlu0 %568
    %v570 = vadd.f32 %v551, %v552
    %571 = vadd.xlane.f32.xlu0 %v570
    %v572 = vpop.xlane.xlu0 %571
    %v573 = vadd.f32 %v553, %v554
    %574 = vadd.xlane.f32.xlu0 %v573
    %v575 = vpop.xlane.xlu0 %574
    %v576 = vadd.f32 %v555, %v556
    %577 = vadd.xlane.f32.xlu0 %v576
    %v578 = vpop.xlane.xlu0 %577
    %v579 = vadd.f32 %v557, %v558
    %580 = vadd.xlane.f32.xlu0 %v579
    %v581 = vpop.xlane.xlu0 %580
    %v582 = vadd.f32 %v559, %v560
    %583 = vadd.xlane.f32.xlu0 %v582
    %v584 = vpop.xlane.xlu0 %583
    %v585 = vld [vmem:[%s4] sm:$0xff]
    %v586 = vld [vmem:[%s4 + $0x8] sm:$0xff]
    %v587 = vld [vmem:[%s4 + $0x10] sm:$0xff]
    %v588 = vld [vmem:[%s4 + $0x18] sm:$0xff]
    %v589 = vmul.f32 %v563, %v585
    %v590 = vmul.f32 %v566, %v586
    %v591 = vmul.f32 %v569, %v587
    %v592 = vmul.f32 %v572, %v588
    %v593 = vmul.f32 %v575, %v585
    %v594 = vmul.f32 %v578, %v586
    %v595 = vmul.f32 %v581, %v587
    %v596 = vmul.f32 %v584, %v588
    %v597 = vadd.f32 %v589, %v590
    %v598 = vadd.f32 %v597, %v591
    %v599 = vadd.f32 %v598, %v592
    %v600 = vrot.slane %v599, 4
    %v601 = vadd.f32 %v599, %v600
    %v602 = vrot.slane %v601, 2
    %v603 = vadd.f32 %v601, %v602
    %v604 = vrot.slane %v603, 1
    %v605 = vadd.f32 %v603, %v604
    %v606 = vadd.f32 %v593, %v594
    %v607 = vadd.f32 %v606, %v595
    %v608 = vadd.f32 %v607, %v596
    %v609 = vrot.slane %v608, 4
    %v610 = vadd.f32 %v608, %v609
    %v611 = vrot.slane %v610, 2
    %v612 = vadd.f32 %v610, %v611
    %v613 = vrot.slane %v612, 1
    %v614 = vadd.f32 %v612, %v613
    %v615 = vld [vmem:[%s5] sm:$0x1]
    %v616 = vadd.f32 %v605, %v615
    %v617 = vadd.f32 %v614, %v615
    %618 = vst [vmem:[#allocation2] sm:$0x1] %v616
    %v621 = vcombine.low %v540, %v541
    %v623 = vunpack.c.l.s4 1966171168
    %v624 = vunpack.c.0.s8 %v623
    %v625 = vlaneseq
    %v626 = vshrl.u32 %v625, 7
    %v627 = vsub.s32 %v624, %v626
    %v628 = vrot.slane %v621, %v627
    %v630 = vunpack.c.l.s4 1966171168
    %v631 = vunpack.c.0.s8 %v630
    %v632 = vlaneseq
    %v633 = vshrl.u32 %v632, 7
    %v634 = vsub.s32 %v631, %v633
    %v635 = vrot.slane %v628, %v634
    %v637 = vlaneseq
    %vm638 = vcmp.ge.s32.totalorder %v637, 0
    %vm639 = vcmp.lt.s32.totalorder %v637, 256
    %vm640 = vmand %vm638, %vm639
    %641 = vst.msk [vmem:[#allocation4] ss:$2 sm:$0x3] %vm640, %v635
    %642 = vst [vmem:[#allocation2 + $0x1] sm:$0x1] %v617
    %v645 = vcombine.low %v543, %v544
    %v647 = vunpack.c.l.s4 1966171168
    %v648 = vunpack.c.0.s8 %v647
    %v649 = vlaneseq
    %v650 = vshrl.u32 %v649, 7
    %v651 = vsub.s32 %v648, %v650
    %v652 = vrot.slane %v645, %v651
    %v654 = vunpack.c.l.s4 1966171168
    %v655 = vunpack.c.0.s8 %v654
    %v656 = vlaneseq
    %v657 = vshrl.u32 %v656, 7
    %v658 = vsub.s32 %v655, %v657
    %v659 = vrot.slane %v652, %v658
    %s661 = scalar_lea.vmem [#allocation4], 1
    %662 = vst.msk [vmem:[%s661] ss:$2 sm:$0x3] %vm640, %v659
    // Predicated region
    $region26: #{tpu_custom_call.1} parent=1 // pred_check
      _
    $region27: #{tpu_custom_call.1} parent=1 // pred_check_branch
      %664 = sbr.rel (0) target = $region29
    $region28: #{tpu_custom_call.1} parent=1 // pred_region
      %s666 = ssub.s32 32, 32
      %667 = vsyncadd [#allocation3], %s666
      %s669 = sshll.u32 [#allocation2], 4
      %s670 = int_to_ptr.vmem [resolvable:$true] %s669
      %672 = dma.vmem_to_hbm [thread:$0]  %s670, 32, %s6, [#allocation3]
    $region29: #{tpu_custom_call.1} parent=1 // pred_fallthru
      _
    // Predicated region
    $region30: #{tpu_custom_call.1} parent=1 // pred_check
      _
    $region31: #{tpu_custom_call.1} parent=1 // pred_check_branch
      %674 = sbr.rel (0) target = $region33
    $region32: #{tpu_custom_call.1} parent=1 // pred_region
      %s676 = ssub.s32 64, 64
      %677 = vsyncadd [#allocation5], %s676
      %s679 = sshll.u32 [#allocation4], 4
      %s680 = int_to_ptr.vmem [resolvable:$true] %s679
      %682 = dma.vmem_to_hbm [thread:$0]  %s680, 64, %s7, [#allocation5]
    $region33: #{tpu_custom_call.1} parent=1 // pred_fallthru
      _
    // Predicated region
    $region34: #{tpu_custom_call.1} parent=1 // pred_check
      _
    $region35: #{tpu_custom_call.1} parent=1 // pred_check_branch
      %684 = sbr.rel (0) target = $region37
    $region36: #{tpu_custom_call.1} parent=1 // pred_region
      %685 = dma.done [#allocation3], 32
    $region37: #{tpu_custom_call.1} parent=1 // pred_fallthru
      _
    // Predicated region
    $region38: #{tpu_custom_call.1} parent=1 // pred_check
      _
    $region39: #{tpu_custom_call.1} parent=1 // pred_check_branch
      %687 = sbr.rel (0) target = $region41
    $region40: #{tpu_custom_call.1} parent=1 // pred_region
      %688 = dma.done [#allocation5], 64
    $region41: #{tpu_custom_call.1} parent=1 // pred_fallthru
      _
    %689 = vsyncpa [#allocation3], 1
    %690 = vsyncpa [#allocation5], 1

</llo_original>
